<compile_context>
chip_gen: v7x
topology: tpu7x:2x2x1
jax: 0.10.0
libtpu: 0.0.40
codegen_flags: <defaults>
</compile_context>

<pallas_src>
import functools

import jax
import jax.numpy as jnp
from jax.experimental import pallas as pl
from jax.experimental.pallas import tpu as pltpu

EPS = 1e-8
LANE = 128


def _round_up(x, m):
    return (x + m - 1) // m * m


# ---------------------------------------------------------------------------
# Pass 1: depthwise conv + PReLU per L-tile, accumulate gLN sum / sum-of-squares
# ---------------------------------------------------------------------------
def _dw_prelu_stats_kernel(x_ref, wdw_ref, alpha_ref, y_ref, s_ref, ss_ref, *,
                           kernel_size, dilation, tile_l, l_out, l_padded):
    # x_ref    : (1, 1, C, tile_l + halo) f32   pre-halo'd input tile (auto-DMA)
    # wdw_ref  : (C, K) f32                     depthwise weights (whole, VMEM)
    # alpha_ref: (1,)   f32                     PReLU shared slope (SMEM)
    # y_ref    : (1, C, tile_l) bf16            activation temp (lane-dense tile)
    # s_ref/ss_ref: (1, 1, 1) f32               per-batch sum / sumsq accumulators
    t = pl.program_id(1)
    xw = x_ref[0, 0]                           # (C, tile_l + halo)
    wdw = wdw_ref[...]                         # (C, K)
    C = wdw.shape[0]

    # depthwise conv: K static taps = static-offset slices of the halo'd tile
    acc = jnp.zeros((C, tile_l), jnp.float32)
    for k in range(kernel_size):
        off = k * dilation
        acc = acc + wdw[:, k:k + 1] * xw[:, off:off + tile_l]

    # PReLU (single shared slope, matching nn.PReLU() default)
    alpha = alpha_ref[0]
    y = jnp.where(acc >= 0, acc, alpha * acc)

    if l_padded != l_out:
        # zero lane-padding columns so the stats stay exact and the bf16 temp is clean
        col = t * tile_l + jax.lax.broadcasted_iota(jnp.int32, (C, tile_l), 1)
        y = jnp.where(col < l_out, y, 0.0)

    # gLN statistics: per-tile partial sums accumulated across the L-tile axis
    @pl.when(t == 0)
    def _():
        s_ref[...] = jnp.zeros((1, 1, 1), jnp.float32)
        ss_ref[...] = jnp.zeros((1, 1, 1), jnp.float32)

    s_part = jnp.sum(jnp.sum(y, axis=1, keepdims=True), axis=0, keepdims=True)
    ss_part = jnp.sum(jnp.sum(y * y, axis=1, keepdims=True), axis=0, keepdims=True)
    # TODO(synk): Welford/Chan merge of per-tile moments for very large C*L.
    s_ref[0] += s_part
    ss_ref[0] += ss_part

    y_ref[0] = y.astype(y_ref.dtype)


# ---------------------------------------------------------------------------
# Pass 2: gLN folded into the pointwise 1x1 conv (bf16 MXU, f32 accumulate)
# ---------------------------------------------------------------------------
def _gln_pointwise_kernel(y_ref, s_ref, ss_ref, gamma_ref, beta_ref, wpw_ref,
                          out_ref, weff_ref, bias_ref, *, n_elems):
    # y_ref    : (1, C, tile_l) bf16
    # s/ss_ref : (1, 1, 1) f32  per-batch stats
    # gamma/beta: (1, C) f32 ; wpw: (O, C) f32
    # out_ref  : (1, O, tile_l) f32
    # weff_ref : (O, C) bf16 scratch ; bias_ref: (O, 1) f32 scratch
    t = pl.program_id(1)

    @pl.when(t == 0)
    def _():
        # fold gamma*(y-mean)*inv_std + beta into the pointwise weights, once per batch
        inv_n = 1.0 / n_elems
        mean = s_ref[0] * inv_n                               # (1, 1)
        var = jnp.maximum(ss_ref[0] * inv_n - mean * mean, 0.0)
        inv_std = jax.lax.rsqrt(var + EPS)                    # EUP rsqrt
        scale_row = gamma_ref[...] * inv_std                  # (1, C)
        shift_row = beta_ref[...] - scale_row * mean          # (1, C)
        wpw = wpw_ref[...]                                    # (O, C)
        weff_ref[...] = (wpw * scale_row).astype(weff_ref.dtype)     # bf16 MXU operand
        bias_ref[...] = jnp.sum(wpw * shift_row, axis=1, keepdims=True)  # (O, 1)

    out = jnp.dot(weff_ref[...], y_ref[0],
                  preferred_element_type=jnp.float32) + bias_ref[...]
    out_ref[0] = out.astype(out_ref.dtype)


# ---------------------------------------------------------------------------
# Wrapper
# ---------------------------------------------------------------------------
def depthwise_separable_conv(x, w_dw, alpha, gamma_row, beta_row, w_pw, *,
                             stride, padding, dilation, tile_l=None):
    """x: (B, C, L) f32 -> (B, O, L_out) f32."""
    B, C, L = x.shape
    O = w_pw.shape[0]
    K = w_dw.shape[1]
    if stride != 1:
        raise NotImplementedError("stride > 1 not implemented")  # TODO(synk)

    L_out = L + 2 * padding - dilation * (K - 1)
    halo = dilation * (K - 1)
    if tile_l is None:
        tile_l = min(512, _round_up(L_out, LANE))   # lane-dense tile
    assert tile_l % LANE == 0 and tile_l > 0
    Lp = _round_up(L_out, tile_l)                   # padded (lane-dense) output length
    n_lt = Lp // tile_l
    tl_in = tile_l + halo

    # layout plumbing (XLA side): conv zero-padding + non-overlapping halo'd tiles
    # so the kernel only does static-offset slices and holds one tile in VMEM.
    l_need = Lp + halo
    x_pad = jnp.pad(x, ((0, 0), (0, 0), (padding, l_need - L - padding)))
    x_tiles = jnp.stack(
        [x_pad[:, :, t * tile_l: t * tile_l + tl_in] for t in range(n_lt)],
        axis=1)                                     # (B, n_lt, C, tile_l + halo)

    # ---- pass 1: depthwise + PReLU + gLN stats ----
    dw_kernel = functools.partial(
        _dw_prelu_stats_kernel, kernel_size=K, dilation=dilation,
        tile_l=tile_l, l_out=L_out, l_padded=Lp)
    y_bf16, s_sum, s_sq = pl.pallas_call(
        dw_kernel,
        out_shape=(jax.ShapeDtypeStruct((B, C, Lp), jnp.bfloat16),
                   jax.ShapeDtypeStruct((B, 1, 1), jnp.float32),
                   jax.ShapeDtypeStruct((B, 1, 1), jnp.float32)),
        grid_spec=pltpu.PrefetchScalarGridSpec(
            num_scalar_prefetch=0,
            grid=(B, n_lt),
            in_specs=[
                pl.BlockSpec((1, 1, C, tl_in), lambda b, t: (b, t, 0, 0)),  # x tile
                pl.BlockSpec(memory_space=pltpu.MemorySpace.VMEM),          # w_dw
                pl.BlockSpec(memory_space=pltpu.MemorySpace.SMEM),          # alpha
            ],
            out_specs=[
                pl.BlockSpec((1, C, tile_l), lambda b, t: (b, 0, t)),       # y temp
                pl.BlockSpec((1, 1, 1), lambda b, t: (b, 0, 0)),            # sum
                pl.BlockSpec((1, 1, 1), lambda b, t: (b, 0, 0)),            # sumsq
            ],
        ),
        compiler_params=pltpu.CompilerParams(
            dimension_semantics=("parallel", "arbitrary"),
            vmem_limit_bytes=32 * 1024 * 1024),
    )(x_tiles, w_dw, alpha)

    # ---- pass 2: folded gLN + pointwise 1x1 conv ----
    pw_kernel = functools.partial(_gln_pointwise_kernel, n_elems=float(C * L_out))
    out_full = pl.pallas_call(
        pw_kernel,
        out_shape=jax.ShapeDtypeStruct((B, O, Lp), jnp.float32),
        grid_spec=pltpu.PrefetchScalarGridSpec(
            num_scalar_prefetch=0,
            grid=(B, n_lt),
            in_specs=[
                pl.BlockSpec((1, C, tile_l), lambda b, t: (b, 0, t)),       # y temp
                pl.BlockSpec((1, 1, 1), lambda b, t: (b, 0, 0)),            # sum
                pl.BlockSpec((1, 1, 1), lambda b, t: (b, 0, 0)),            # sumsq
                pl.BlockSpec(memory_space=pltpu.MemorySpace.VMEM),          # gamma
                pl.BlockSpec(memory_space=pltpu.MemorySpace.VMEM),          # beta
                pl.BlockSpec(memory_space=pltpu.MemorySpace.VMEM),          # w_pw
            ],
            out_specs=pl.BlockSpec((1, O, tile_l), lambda b, t: (b, 0, t)),
            scratch_shapes=[pltpu.VMEM((O, C), jnp.bfloat16),   # folded weights
                            pltpu.VMEM((O, 1), jnp.float32)],   # folded bias
        ),
        compiler_params=pltpu.CompilerParams(
            dimension_semantics=("parallel", "arbitrary"),
            vmem_limit_bytes=32 * 1024 * 1024),
    )(y_bf16, s_sum, s_sq, gamma_row, beta_row, w_pw)

    return out_full[:, :, :L_out] if Lp != L_out else out_full


# ---------------------------------------------------------------------------
# Pure-JAX reference replicating the PyTorch forward semantics (f32 everywhere)
# ---------------------------------------------------------------------------
def reference(x, w_dw, alpha, gamma_row, beta_row, w_pw, *,
              stride, padding, dilation):
    B, C, L = x.shape
    K = w_dw.shape[1]
    L_out = (L + 2 * padding - dilation * (K - 1) - 1) // stride + 1
    x_pad = jnp.pad(x, ((0, 0), (0, 0), (padding, padding)))
    y = jnp.zeros((B, C, L_out), jnp.float32)
    for k in range(K):
        start = k * dilation
        sl = jax.lax.slice(x_pad, (0, 0, start),
                           (B, C, start + (L_out - 1) * stride + 1),
                           (1, 1, stride))
        y = y + w_dw[None, :, k:k + 1] * sl
    y = jnp.where(y >= 0, y, alpha[0] * y)
    mean = y.mean(axis=1, keepdims=True).mean(axis=2, keepdims=True)
    var = ((y - mean) ** 2).mean(axis=1, keepdims=True).mean(axis=2, keepdims=True)
    gamma3 = gamma_row.reshape(1, C, 1)
    beta3 = beta_row.reshape(1, C, 1)
    y = gamma3 * (y - mean) / jnp.sqrt(var + EPS) + beta3
    return jnp.einsum("oc,bcl->bol", w_pw, y)


if __name__ == "__main__":
    B, C_in, C_out = 2, 4, 8
    kernel_size, stride, padding, dilation = 3, 1, 1, 1

    key = jax.random.PRNGKey(0)
    k1, k2, k3, k4, k5, k6 = jax.random.split(key, 6)

    w_dw = jax.random.normal(k2, (C_in, kernel_size), jnp.float32) * 0.5
    w_pw = jax.random.normal(k3, (C_out, C_in), jnp.float32) * 0.5
    alpha = jnp.array([0.25], jnp.float32)            # nn.PReLU() default
    gamma_row = jnp.ones((1, C_in), jnp.float32)      # gLN init
    beta_row = jnp.zeros((1, C_in), jnp.float32)

    # bf16 MXU operands (per perf review) -> compare against the f32 reference
    # with a correspondingly looser tolerance.
    TOL = 5e-2

    # config 1: small shape from the module example (single L-tile, masked tail)
    L = 16
    x = jax.random.normal(k1, (B, C_in, L), jnp.float32)
    out = depthwise_separable_conv(x, w_dw, alpha, gamma_row, beta_row, w_pw,
                                   stride=stride, padding=padding, dilation=dilation)
    out = jax.block_until_ready(out)
    ref = reference(x, w_dw, alpha, gamma_row, beta_row, w_pw,
                    stride=stride, padding=padding, dilation=dilation)
    assert out.shape == (B, C_out, L)
    assert jnp.allclose(out, ref, atol=TOL, rtol=TOL), \
        float(jnp.max(jnp.abs(out - ref)))

    # config 2: multi-tile L axis (n_lt=2) + non-trivial gLN affine params
    L2 = 200
    x2 = jax.random.normal(k4, (B, C_in, L2), jnp.float32)
    gamma2 = 1.0 + 0.1 * jax.random.normal(k5, (1, C_in), jnp.float32)
    beta2 = 0.1 * jax.random.normal(k6, (1, C_in), jnp.float32)
    out2 = depthwise_separable_conv(x2, w_dw, alpha, gamma2, beta2, w_pw,
                                    stride=stride, padding=padding,
                                    dilation=dilation, tile_l=128)
    out2 = jax.block_until_ready(out2)
    ref2 = reference(x2, w_dw, alpha, gamma2, beta2, w_pw,
                     stride=stride, padding=padding, dilation=dilation)
    assert out2.shape == (B, C_out, L2)
    assert jnp.allclose(out2, ref2, atol=TOL, rtol=TOL), \
        float(jnp.max(jnp.abs(out2 - ref2)))

    print("KERNEL_OK")
</pallas_src>

<mosaic_0001>
module attributes {stable_mosaic.version = 11 : i64} {
  func.func @_dw_prelu_stats_kernel(%arg0: i32, %arg1: i32, %arg2: memref<1x1x4x130xf32, #tpu.memory_space<vmem>>, %arg3: memref<4x3xf32, #tpu.memory_space<vmem>>, %arg4: memref<1xf32, #tpu.memory_space<smem>>, %arg5: memref<1x4x128xbf16, #tpu.memory_space<vmem>>, %arg6: memref<1x1x1xf32, #tpu.memory_space<vmem>>, %arg7: memref<1x1x1xf32, #tpu.memory_space<vmem>>) attributes {dimension_semantics = [#tpu.dimension_semantics<parallel>, #tpu.dimension_semantics<arbitrary>], iteration_bounds = array<i64: 2, 1>, scalar_prefetch = 0 : i64, scratch_operands = 0 : i64, tpu.core_type = #tpu.core_type<tc>, window_params = [{transform_indices = @transform_0, window_bounds = array<i64: 1, 1, 4, 130>}, {pipeline_mode = #tpu.pipeline_mode<synchronous>, transform_indices = @transform_1, window_bounds = array<i64: 4, 3>}, {transform_indices = @transform_2, window_bounds = array<i64: 1>}, {transform_indices = @transform_3, window_bounds = array<i64: 1, 4, 128>}, {transform_indices = @transform_4, window_bounds = array<i64: 1, 1, 1>}, {transform_indices = @transform_5, window_bounds = array<i64: 1, 1, 1>}]} {
    %c0 = arith.constant 0 : index
    %c0_0 = arith.constant 0 : index
    %c0_1 = arith.constant 0 : index
    %c0_2 = arith.constant 0 : index
    %0 = vector.load %arg2[%c0, %c0_0, %c0_1, %c0_2] : memref<1x1x4x130xf32, #tpu.memory_space<vmem>>, vector<1x1x4x130xf32>
    %1 = vector.shape_cast %0 : vector<1x1x4x130xf32> to vector<4x130xf32>
    %c0_3 = arith.constant 0 : index
    %c0_4 = arith.constant 0 : index
    %2 = vector.load %arg3[%c0_3, %c0_4] : memref<4x3xf32, #tpu.memory_space<vmem>>, vector<4x3xf32>
    %cst = arith.constant 0.000000e+00 : f32
    %3 = vector.broadcast %cst : f32 to vector<4x128xf32>
    %4 = vector.extract_strided_slice %2 {offsets = [0, 0], sizes = [4, 1], strides = [1, 1]} : vector<4x3xf32> to vector<4x1xf32>
    %5 = vector.extract_strided_slice %1 {offsets = [0, 0], sizes = [4, 128], strides = [1, 1]} : vector<4x130xf32> to vector<4x128xf32>
    %6 = vector.broadcast %4 : vector<4x1xf32> to vector<4x128xf32>
    %7 = arith.mulf %6, %5 : vector<4x128xf32>
    %8 = arith.addf %3, %7 : vector<4x128xf32>
    %9 = vector.extract_strided_slice %2 {offsets = [0, 1], sizes = [4, 1], strides = [1, 1]} : vector<4x3xf32> to vector<4x1xf32>
    %10 = vector.extract_strided_slice %1 {offsets = [0, 1], sizes = [4, 128], strides = [1, 1]} : vector<4x130xf32> to vector<4x128xf32>
    %11 = vector.broadcast %9 : vector<4x1xf32> to vector<4x128xf32>
    %12 = arith.mulf %11, %10 : vector<4x128xf32>
    %13 = arith.addf %8, %12 : vector<4x128xf32>
    %14 = vector.extract_strided_slice %2 {offsets = [0, 2], sizes = [4, 1], strides = [1, 1]} : vector<4x3xf32> to vector<4x1xf32>
    %15 = vector.extract_strided_slice %1 {offsets = [0, 2], sizes = [4, 128], strides = [1, 1]} : vector<4x130xf32> to vector<4x128xf32>
    %16 = vector.broadcast %14 : vector<4x1xf32> to vector<4x128xf32>
    %17 = arith.mulf %16, %15 : vector<4x128xf32>
    %18 = arith.addf %13, %17 : vector<4x128xf32>
    %c0_5 = arith.constant 0 : index
    %19 = memref.load %arg4[%c0_5] : memref<1xf32, #tpu.memory_space<smem>>
    %cst_6 = arith.constant 0.000000e+00 : f32
    %20 = vector.broadcast %cst_6 : f32 to vector<4x128xf32>
    %21 = arith.cmpf oge, %18, %20 : vector<4x128xf32>
    %22 = vector.broadcast %19 : f32 to vector<4x128xf32>
    %23 = arith.mulf %22, %18 : vector<4x128xf32>
    %24 = arith.select %21, %18, %23 : vector<4x128xi1>, vector<4x128xf32>
    %c128_i32 = arith.constant 128 : i32
    %25 = arith.muli %arg1, %c128_i32 : i32
    %26 = tpu.iota {dimensions = array<i32: 1>} : vector<4x128xi32>
    %27 = vector.broadcast %25 : i32 to vector<4x128xi32>
    %28 = arith.addi %27, %26 : vector<4x128xi32>
    %c16_i32 = arith.constant 16 : i32
    %29 = vector.broadcast %c16_i32 : i32 to vector<4x128xi32>
    %30 = arith.cmpi slt, %28, %29 : vector<4x128xi32>
    %cst_7 = arith.constant 0.000000e+00 : f32
    %31 = vector.broadcast %cst_7 : f32 to vector<4x128xf32>
    %32 = arith.select %30, %24, %31 : vector<4x128xi1>, vector<4x128xf32>
    %c0_i32 = arith.constant 0 : i32
    %33 = arith.cmpi eq, %arg1, %c0_i32 : i32
    %34 = arith.extui %33 : i1 to i32
    %c0_i32_8 = arith.constant 0 : i32
    %35 = arith.cmpi ne, %34, %c0_i32_8 : i32
    scf.if %35 {
      %cst_28 = arith.constant 0.000000e+00 : f32
      %61 = vector.broadcast %cst_28 : f32 to vector<1x1x1xf32>
      %c0_29 = arith.constant 0 : index
      %c0_30 = arith.constant 0 : index
      %c0_31 = arith.constant 0 : index
      %62 = vector.load %arg6[%c0_29, %c0_30, %c0_31] : memref<1x1x1xf32, #tpu.memory_space<vmem>>, vector<1x1x1xf32>
      tpu.vector_store %arg6[%c0_29, %c0_30, %c0_31], %61 {strides = array<i32>} : memref<1x1x1xf32, #tpu.memory_space<vmem>>, vector<1x1x1xf32>,
      %cst_32 = arith.constant 0.000000e+00 : f32
      %63 = vector.broadcast %cst_32 : f32 to vector<1x1x1xf32>
      %c0_33 = arith.constant 0 : index
      %c0_34 = arith.constant 0 : index
      %c0_35 = arith.constant 0 : index
      %64 = vector.load %arg7[%c0_33, %c0_34, %c0_35] : memref<1x1x1xf32, #tpu.memory_space<vmem>>, vector<1x1x1xf32>
      tpu.vector_store %arg7[%c0_33, %c0_34, %c0_35], %63 {strides = array<i32>} : memref<1x1x1xf32, #tpu.memory_space<vmem>>, vector<1x1x1xf32>,
    } else {
    }
    %cst_9 = arith.constant dense<0.000000e+00> : vector<4xf32>
    %36 = vector.multi_reduction <add>, %32, %cst_9 [1] : vector<4x128xf32> to vector<4xf32>
    %37 = vector.shape_cast %36 : vector<4xf32> to vector<4x1xf32>
    %cst_10 = arith.constant dense<0.000000e+00> : vector<1xf32>
    %38 = vector.multi_reduction <add>, %37, %cst_10 [0] : vector<4x1xf32> to vector<1xf32>
    %39 = vector.shape_cast %38 : vector<1xf32> to vector<1x1xf32>
    %40 = arith.mulf %32, %32 : vector<4x128xf32>
    %cst_11 = arith.constant dense<0.000000e+00> : vector<4xf32>
    %41 = vector.multi_reduction <add>, %40, %cst_11 [1] : vector<4x128xf32> to vector<4xf32>
    %42 = vector.shape_cast %41 : vector<4xf32> to vector<4x1xf32>
    %cst_12 = arith.constant dense<0.000000e+00> : vector<1xf32>
    %43 = vector.multi_reduction <add>, %42, %cst_12 [0] : vector<4x1xf32> to vector<1xf32>
    %44 = vector.shape_cast %43 : vector<1xf32> to vector<1x1xf32>
    %c0_13 = arith.constant 0 : index
    %c0_14 = arith.constant 0 : index
    %c0_15 = arith.constant 0 : index
    %45 = vector.load %arg6[%c0_13, %c0_14, %c0_15] : memref<1x1x1xf32, #tpu.memory_space<vmem>>, vector<1x1x1xf32>
    %46 = vector.shape_cast %45 : vector<1x1x1xf32> to vector<1x1xf32>
    %47 = arith.addf %46, %39 : vector<1x1xf32>
    %c0_16 = arith.constant 0 : index
    %c0_17 = arith.constant 0 : index
    %c0_18 = arith.constant 0 : index
    %48 = vector.load %arg6[%c0_16, %c0_17, %c0_18] : memref<1x1x1xf32, #tpu.memory_space<vmem>>, vector<1x1x1xf32>
    %49 = vector.shape_cast %48 : vector<1x1x1xf32> to vector<1x1xf32>
    %50 = vector.shape_cast %47 : vector<1x1xf32> to vector<1x1x1xf32>
    tpu.vector_store %arg6[%c0_16, %c0_17, %c0_18], %50 {strides = array<i32>} : memref<1x1x1xf32, #tpu.memory_space<vmem>>, vector<1x1x1xf32>,
    %c0_19 = arith.constant 0 : index
    %c0_20 = arith.constant 0 : index
    %c0_21 = arith.constant 0 : index
    %51 = vector.load %arg7[%c0_19, %c0_20, %c0_21] : memref<1x1x1xf32, #tpu.memory_space<vmem>>, vector<1x1x1xf32>
    %52 = vector.shape_cast %51 : vector<1x1x1xf32> to vector<1x1xf32>
    %53 = arith.addf %52, %44 : vector<1x1xf32>
    %c0_22 = arith.constant 0 : index
    %c0_23 = arith.constant 0 : index
    %c0_24 = arith.constant 0 : index
    %54 = vector.load %arg7[%c0_22, %c0_23, %c0_24] : memref<1x1x1xf32, #tpu.memory_space<vmem>>, vector<1x1x1xf32>
    %55 = vector.shape_cast %54 : vector<1x1x1xf32> to vector<1x1xf32>
    %56 = vector.shape_cast %53 : vector<1x1xf32> to vector<1x1x1xf32>
    tpu.vector_store %arg7[%c0_22, %c0_23, %c0_24], %56 {strides = array<i32>} : memref<1x1x1xf32, #tpu.memory_space<vmem>>, vector<1x1x1xf32>,
    %57 = arith.truncf %32 : vector<4x128xf32> to vector<4x128xbf16>
    %c0_25 = arith.constant 0 : index
    %c0_26 = arith.constant 0 : index
    %c0_27 = arith.constant 0 : index
    %58 = vector.load %arg5[%c0_25, %c0_26, %c0_27] : memref<1x4x128xbf16, #tpu.memory_space<vmem>>, vector<1x4x128xbf16>
    %59 = vector.shape_cast %58 : vector<1x4x128xbf16> to vector<4x128xbf16>
    %60 = vector.shape_cast %57 : vector<4x128xbf16> to vector<1x4x128xbf16>
    tpu.vector_store %arg5[%c0_25, %c0_26, %c0_27], %60 {strides = array<i32>} : memref<1x4x128xbf16, #tpu.memory_space<vmem>>, vector<1x4x128xbf16>,
    return
  }
  func.func @transform_0(%arg0: i32, %arg1: i32) -> (i32, i32, i32, i32) {
    %c0_i32 = arith.constant 0 : i32
    %c0_i32_0 = arith.constant 0 : i32
    %c0_i32_1 = arith.constant 0 : i32
    return %arg0, %arg1, %c0_i32, %c0_i32_0 : i32, i32, i32, i32
  }
  func.func @transform_1(%arg0: i32, %arg1: i32) -> (i32, i32) {
    %c0_i32 = arith.constant 0 : i32
    %c0_i32_0 = arith.constant 0 : i32
    %c0_i32_1 = arith.constant 0 : i32
    return %c0_i32, %c0_i32_0 : i32, i32
  }
  func.func @transform_2(%arg0: i32, %arg1: i32) -> i32 {
    %c0_i32 = arith.constant 0 : i32
    %c0_i32_0 = arith.constant 0 : i32
    return %c0_i32 : i32
  }
  func.func @transform_3(%arg0: i32, %arg1: i32) -> (i32, i32, i32) {
    %c0_i32 = arith.constant 0 : i32
    %c0_i32_0 = arith.constant 0 : i32
    return %arg0, %c0_i32, %arg1 : i32, i32, i32
  }
  func.func @transform_4(%arg0: i32, %arg1: i32) -> (i32, i32, i32) {
    %c0_i32 = arith.constant 0 : i32
    %c0_i32_0 = arith.constant 0 : i32
    %c0_i32_1 = arith.constant 0 : i32
    return %arg0, %c0_i32, %c0_i32_0 : i32, i32, i32
  }
  func.func @transform_5(%arg0: i32, %arg1: i32) -> (i32, i32, i32) {
    %c0_i32 = arith.constant 0 : i32
    %c0_i32_0 = arith.constant 0 : i32
    %c0_i32_1 = arith.constant 0 : i32
    return %arg0, %c0_i32, %c0_i32_0 : i32, i32, i32
  }
}

</mosaic_0001>

<llo_original>
// kernel: tpu_custom_call.1
$region0: #{tpu_custom_call.1}
  #allocation0 [shape = 'u32[]', space=smem, size = 0x4, offset = 0x4, fixed_abs, tag = 'smem constant byte address 0x4 - core index']
  #allocation1 [shape = 'u32[144,128]{1,0:T(1,128)}', space=vmem, size = 0x12000, scoped, tag = 'internal scratch']
  #allocation2 [shape = 'f32[1]{0:T(128)S(6)}', space=smem, size = 0x200, scoped, tag = 'scoped memory for tpu_custom_call.1']
  %s0 = inlined_call_operand.hbm [shape: f32[2,1,4,130], index: 0, kind: input, shape index: {}]
  %s1 = inlined_call_operand.vmem [shape: f32[4,3], index: 1, kind: input, shape index: {}]
  %s2 = inlined_call_operand.<no memory space> [shape: f32[1], index: 2, kind: input, shape index: {}]
  %s3 = inlined_call_operand.hbm [shape: bf16[2,4,128], index: 3, kind: output, shape index: {0}]
  %s4 = inlined_call_operand.vmem [shape: f32[2,1,1], index: 4, kind: output, shape index: {1}]
  %s5 = inlined_call_operand.vmem [shape: f32[2,1,1], index: 5, kind: output, shape index: {2}]
  %6 = xla_tuple %s3, %s4, %s5
  %s7 = sld [smem:[#allocation0]]
  $region69: #{tpu_custom_call.1} parent=0
    _
  %s9 = ssub.s32 1, %s7
  %s10 = scalar_select 0, %s9, %s7
  %11 = sst [smem:[#allocation2]] %s2
  $region1: #{tpu_custom_call.1} parent=0
    #allocation3 [shape = 'u8[8192]{0}', space=vmem, size = 0x2000, scoped, tag = 'input window, operand 0']
    #allocation4 [shape = 's32[2]{0}', space=sflag, size = 0x8, scoped, tag = 'scoped memory for tpu_custom_call.1']
    #allocation5 [shape = 's32[2]{0}', space=sflag, size = 0x8, scoped, tag = 'scoped memory for tpu_custom_call.1']
    #allocation6 [shape = 'u8[2048]{0}', space=vmem, size = 0x800, scoped, tag = 'output window, operand 0']
    %12 = vsyncpa [#allocation4], 0
    %s13 = scalar_lea.sflag [#allocation4], 1
    %14 = vsyncpa %s13, 0
    %15 = vsyncpa [#allocation5], 0
    %s16 = scalar_lea.sflag [#allocation5], 1
    %17 = vsyncpa %s16, 0
    loop: start=0, step=1, limit=4
    $region2: #{tpu_custom_call.1} parent=1 // loop_pre_header
      _
    $region3: #{tpu_custom_call.1} parent=1 // loop_header
      %s19 = sphi 0, %s23
      %p20 = scmp.ge.s32.totalorder %s19, 4
      %s26 = sphi 0, %s38
      %s27 = sphi 0, %s34
      %s28 = sphi 0, %s26
      %s29 = sphi 0, %s27
      %s30 = sphi 0, %s28
      %s31 = sphi 0, %s29
      %s43 = sphi 0, %s45
      %s46 = sphi 0, %s43
      %s47 = sphi 0, %s46
      %s63 = sphi 0, %s47
      %s67 = sphi 0, %s67
      %s69 = sphi 0, %s67
      %s70 = sphi 0, %s69
      %s84 = sphi 0, %s70
      %s88 = sphi 0, %s88
      %s90 = sphi 0, %s88
      %s91 = sphi 0, %s90
      %s105 = sphi 0, %s91
      %s113 = sphi 0, %s115
      %s116 = sphi 0, %s113
      %s117 = sphi 0, %s116
      %s133 = sphi 0, %s117
      %s139 = sphi 0, %s141
      %s142 = sphi 0, %s139
      %s143 = sphi 0, %s142
      %s159 = sphi 0, %s143
      %s165 = sphi 0, %s167
      %s168 = sphi 0, %s165
      %s169 = sphi 0, %s168
      %s185 = sphi 0, %s169
    $region4: #{tpu_custom_call.1} parent=1 // loop_header_branch
      %22 = sbr.rel (%p20) target = $region8
    $region5: #{tpu_custom_call.1} parent=1 // loop_body
      %s24 = ssub.s32 %s19, 1
      %s25 = ssub.s32 %s19, 2
      %s32 = sadd.s32 1, %s27
      %p33 = scmp.ge.s32.totalorder %s32, 1
      %s34 = scalar_select %p33, 0, %s32
      %s35 = sadd.s32 1, %s26
      %s36 = scalar_select %p33, %s35, %s26
      %p37 = scmp.ge.s32.totalorder %s36, 2
      %s38 = scalar_select %p37, 0, %s36
      %s39 = ssub.s32 %s26, %s38
      %s40 = ssub.s32 %s27, %s34
      %s41 = sor.u32 %s39, %s40
      %p42 = scmp.eq.s32.totalorder %s41, 0
      %s44 = sadd.s32 %s43, 1
      %s45 = scalar_select %p42, %s43, %s44
      %p48 = pneg %p42
      %p49 = scmp.eq.s32.totalorder %s19, 1
      %p50 = por %p48, %p49
      %p51 = scmp.ne.s32.totalorder %s43, %s46
      %p52 = scmp.eq.s32.totalorder %s19, 0
      %p53 = por %p51, %p52
      %p54 = scmp.ne.s32.totalorder %s43, %s46
      %p55 = scmp.eq.s32.totalorder %s24, 1
      %p56 = por %p54, %p55
      %p57 = scmp.ne.s32.totalorder %s46, %s47
      %p58 = scmp.eq.s32.totalorder %s24, 0
      %p59 = por %p57, %p58
      %p60 = scmp.ne.s32.totalorder %s46, %s47
      %p61 = scmp.eq.s32.totalorder %s25, 1
      %p62 = por %p60, %p61
      %p64 = scmp.ne.s32.totalorder %s47, %s63
      %p65 = scmp.eq.s32.totalorder %s25, 0
      %p66 = por %p64, %p65
      %s68 = sadd.s32 %s67, 1
      %p71 = scmp.eq.s32.totalorder %s19, 1
      %p72 = scmp.ne.s32.totalorder %s67, %s69
      %p73 = scmp.eq.s32.totalorder %s19, 0
      %p74 = por %p72, %p73
      %p75 = scmp.ne.s32.totalorder %s67, %s69
      %p76 = scmp.eq.s32.totalorder %s24, 1
      %p77 = por %p75, %p76
      %p78 = scmp.ne.s32.totalorder %s69, %s70
      %p79 = scmp.eq.s32.totalorder %s24, 0
      %p80 = por %p78, %p79
      %p81 = scmp.ne.s32.totalorder %s69, %s70
      %p82 = scmp.eq.s32.totalorder %s25, 1
      %p83 = por %p81, %p82
      %p85 = scmp.ne.s32.totalorder %s70, %s84
      %p86 = scmp.eq.s32.totalorder %s25, 0
      %p87 = por %p85, %p86
      %s89 = sadd.s32 %s88, 1
      %p92 = scmp.eq.s32.totalorder %s19, 1
      %p93 = scmp.ne.s32.totalorder %s88, %s90
      %p94 = scmp.eq.s32.totalorder %s19, 0
      %p95 = por %p93, %p94
      %p96 = scmp.ne.s32.totalorder %s88, %s90
      %p97 = scmp.eq.s32.totalorder %s24, 1
      %p98 = por %p96, %p97
      %p99 = scmp.ne.s32.totalorder %s90, %s91
      %p100 = scmp.eq.s32.totalorder %s24, 0
      %p101 = por %p99, %p100
      %p102 = scmp.ne.s32.totalorder %s90, %s91
      %p103 = scmp.eq.s32.totalorder %s25, 1
      %p104 = por %p102, %p103
      %p106 = scmp.ne.s32.totalorder %s91, %s105
      %p107 = scmp.eq.s32.totalorder %s25, 0
      %p108 = por %p106, %p107
      %s109 = ssub.s32 %s26, %s38
      %s110 = ssub.s32 %s27, %s34
      %s111 = sor.u32 %s109, %s110
      %p112 = scmp.eq.s32.totalorder %s111, 0
      %s114 = sadd.s32 %s113, 1
      %s115 = scalar_select %p112, %s113, %s114
      %p118 = pneg %p112
      %p119 = scmp.eq.s32.totalorder %s19, 1
      %p120 = por %p118, %p119
      %p121 = scmp.ne.s32.totalorder %s113, %s116
      %p122 = scmp.eq.s32.totalorder %s19, 0
      %p123 = por %p121, %p122
      %p124 = scmp.ne.s32.totalorder %s113, %s116
      %p125 = scmp.eq.s32.totalorder %s24, 1
      %p126 = por %p124, %p125
      %p127 = scmp.ne.s32.totalorder %s116, %s117
      %p128 = scmp.eq.s32.totalorder %s24, 0
      %p129 = por %p127, %p128
      %p130 = scmp.ne.s32.totalorder %s116, %s117
      %p131 = scmp.eq.s32.totalorder %s25, 1
      %p132 = por %p130, %p131
      %p134 = scmp.ne.s32.totalorder %s117, %s133
      %p135 = scmp.eq.s32.totalorder %s25, 0
      %p136 = por %p134, %p135
      %s137 = ssub.s32 %s26, %s38
      %p138 = scmp.eq.s32.totalorder %s137, 0
      %s140 = sadd.s32 %s139, 1
      %s141 = scalar_select %p138, %s139, %s140
      %p144 = pneg %p138
      %p145 = scmp.eq.s32.totalorder %s19, 1
      %p146 = por %p144, %p145
      %p147 = scmp.ne.s32.totalorder %s139, %s142
      %p148 = scmp.eq.s32.totalorder %s19, 0
      %p149 = por %p147, %p148
      %p150 = scmp.ne.s32.totalorder %s139, %s142
      %p151 = scmp.eq.s32.totalorder %s24, 1
      %p152 = por %p150, %p151
      %p153 = scmp.ne.s32.totalorder %s142, %s143
      %p154 = scmp.eq.s32.totalorder %s24, 0
      %p155 = por %p153, %p154
      %p156 = scmp.ne.s32.totalorder %s142, %s143
      %p157 = scmp.eq.s32.totalorder %s25, 1
      %p158 = por %p156, %p157
      %p160 = scmp.ne.s32.totalorder %s143, %s159
      %p161 = scmp.eq.s32.totalorder %s25, 0
      %p162 = por %p160, %p161
      %s163 = ssub.s32 %s26, %s38
      %p164 = scmp.eq.s32.totalorder %s163, 0
      %s166 = sadd.s32 %s165, 1
      %s167 = scalar_select %p164, %s165, %s166
      %p170 = pneg %p164
      %p171 = scmp.eq.s32.totalorder %s19, 1
      %p172 = por %p170, %p171
      %p173 = scmp.ne.s32.totalorder %s165, %s168
      %p174 = scmp.eq.s32.totalorder %s19, 0
      %p175 = por %p173, %p174
      %p176 = scmp.ne.s32.totalorder %s165, %s168
      %p177 = scmp.eq.s32.totalorder %s24, 1
      %p178 = por %p176, %p177
      %p179 = scmp.ne.s32.totalorder %s168, %s169
      %p180 = scmp.eq.s32.totalorder %s24, 0
      %p181 = por %p179, %p180
      %p182 = scmp.ne.s32.totalorder %s168, %s169
      %p183 = scmp.eq.s32.totalorder %s25, 1
      %p184 = por %p182, %p183
      %p186 = scmp.ne.s32.totalorder %s169, %s185
      %p187 = scmp.eq.s32.totalorder %s25, 0
      %p188 = por %p186, %p187
      %p189 = scmp.le.s32.totalorder 1, %s19
      %p190 = scmp.lt.s32.totalorder %s19, 3
      %p191 = pnand %p189, %p190
      %p192 = pneg %p191
      // Predicated region
      $region9: #{tpu_custom_call.1} parent=5 // pred_check
        _
      $region10: #{tpu_custom_call.1} parent=5 // pred_check_branch
        %194 = sbr.rel (%p191) target = $region12
      $region11: #{tpu_custom_call.1} parent=5 // pred_region
        %s195 = ssub.s32 %s19, 1
        // Predicated region
        $region13: #{tpu_custom_call.1} parent=11 // pred_check
          %p196 = pneg %p80
        $region14: #{tpu_custom_call.1} parent=11 // pred_check_branch
          %198 = sbr.rel (%p196) target = $region16
        $region15: #{tpu_custom_call.1} parent=11 // pred_region
          _
        $region16: #{tpu_custom_call.1} parent=11 // pred_fallthru
          _
        // Predicated region
        $region17: #{tpu_custom_call.1} parent=11 // pred_check
          %p199 = pneg %p101
        $region18: #{tpu_custom_call.1} parent=11 // pred_check_branch
          %201 = sbr.rel (%p199) target = $region20
        $region19: #{tpu_custom_call.1} parent=11 // pred_region
          _
        $region20: #{tpu_custom_call.1} parent=11 // pred_fallthru
          _
      $region12: #{tpu_custom_call.1} parent=5 // pred_fallthru
        _
      %p202 = scmp.lt.s32.totalorder %s19, 2
      // Predicated region
      $region21: #{tpu_custom_call.1} parent=5 // pred_check
        %p203 = pneg %p202
      $region22: #{tpu_custom_call.1} parent=5 // pred_check_branch
        %205 = sbr.rel (%p203) target = $region24
      $region23: #{tpu_custom_call.1} parent=5 // pred_region
        // Predicated region
        $region25: #{tpu_custom_call.1} parent=23 // pred_check
          %p206 = pneg %p53
        $region26: #{tpu_custom_call.1} parent=23 // pred_check_branch
          %208 = sbr.rel (%p206) target = $region28
        $region27: #{tpu_custom_call.1} parent=23 // pred_region
          %s209 = sand.u32 %s43, 1
          %s210 = scalar_lea.sflag [#allocation4], %s209
          %s211 = sand.u32 %s43, 1
          %s212 = smul.addr %s211, 8
          %s213 = scalar_lea.vmem [#allocation3], %s212
          %s215 = ssub.s32 128, 128
          %216 = vsyncadd %s210, %s215
          %s217 = smul.addr %s27, 2
          %s218 = smul.addr %s26, 2
          %s219 = sadd.s32 %s217, %s218
          %s220 = smul.addr %s219, 64
          %s221 = scalar_lea.hbm %s0, %s220
          %s223 = sshll.u32 %s213, 4
          %s224 = int_to_ptr.vmem [resolvable:$true] %s223
          %226 = dma.hbm_to_vmem [thread:$0]  %s221, 128, %s224, %s210
        $region28: #{tpu_custom_call.1} parent=23 // pred_fallthru
          _
      $region24: #{tpu_custom_call.1} parent=5 // pred_fallthru
        _
      %p227 = scmp.le.s32.totalorder 1, %s19
      %p228 = scmp.lt.s32.totalorder %s19, 3
      %p229 = pnand %p227, %p228
      %p230 = pneg %p229
      // Predicated region
      $region29: #{tpu_custom_call.1} parent=5 // pred_check
        _
      $region30: #{tpu_custom_call.1} parent=5 // pred_check_branch
        %232 = sbr.rel (%p229) target = $region32
      $region31: #{tpu_custom_call.1} parent=5 // pred_region
        %s233 = ssub.s32 %s19, 1
        %s234 = sand.u32 %s46, 1
        %s235 = scalar_lea.sflag [#allocation4], %s234
        %s236 = sand.u32 %s46, 1
        %s237 = smul.addr %s236, 8
        %s238 = scalar_lea.vmem [#allocation3], %s237
        // Predicated region
        $region33: #{tpu_custom_call.1} parent=31 // pred_check
          %p239 = pneg %p59
        $region34: #{tpu_custom_call.1} parent=31 // pred_check_branch
          %241 = sbr.rel (%p239) target = $region36
        $region35: #{tpu_custom_call.1} parent=31 // pred_region
          %242 = dma.done %s235, 128
        $region36: #{tpu_custom_call.1} parent=31 // pred_fallthru
          _
        %s243 = sand.u32 %s46, 1
        %s244 = scalar_lea.sflag [#allocation4], %s243
        %s245 = sand.u32 %s46, 1
        %s246 = smul.addr %s245, 8
        %s247 = scalar_lea.vmem [#allocation3], %s246
        %p248 = pneg %p59
        %p249 = pneg %p56
        %p250 = pneg %p80
        %p251 = pneg %p77
        %p252 = pneg %p101
        %p253 = pneg %p98
        %p254 = pneg %p129
        %p255 = pneg %p126
        %s256 = sand.u32 %s116, 1
        %s257 = scalar_lea.sflag [#allocation5], %s256
        %s258 = sand.u32 %s116, 1
        %s259 = smul.addr %s258, 2
        %s260 = scalar_lea.vmem [#allocation6], %s259
        %p261 = pneg %p155
        %p262 = pneg %p152
        %p263 = scmp.lt.s32.totalorder %s28, 1
        %s264 = scalar_select %p263, %s28, 1
        %s265 = scalar_lea.vmem %s4, %s264
        %p266 = pneg %p181
        %p267 = pneg %p178
        %p268 = scmp.lt.s32.totalorder %s28, 1
        %s269 = scalar_select %p268, %s28, 1
        %s270 = scalar_lea.vmem %s5, %s269
        %p271 = scmp.lt.s32.totalorder %s28, 1
        %s272 = scalar_select %p271, %s28, 1
        %s273 = scalar_lea.vmem %s4, %s272
        %p274 = scmp.lt.s32.totalorder %s28, 1
        %s275 = scalar_select %p274, %s28, 1
        %s276 = scalar_lea.vmem %s5, %s275
        %v277 = vld [vmem:[%s238] sm:$0xff]
        %v278 = vld [vmem:[%s1] sm:$0xf]
        %280 = vset.pattern.permute.xlu0 0
        %281 = vperm.xlu0 %280, %v278
        %v282 = vpop.permute.xlu0 %281
        %v284 = vmul.f32 %v282, %v277
        %v285 = vadd.f32 %v284, 0.0
        %286 = vset.pattern.permute.xlu0 1
        %287 = vperm.xlu0 %286, %v278
        %v288 = vpop.permute.xlu0 %287
        %v291 = vcombine.high %v277, %v277
        %292 = vrot.lane.b32.xlu0 %v277, 127
        %v293 = vpop.permute.xlu0 %292
        %294 = vrot.lane.b32.xlu0 %v291, 127
        %v295 = vpop.permute.xlu0 %294
        %vm296 = vcmask 1039360
        %v297 = vsel %vm296, %v293, %v295
        %v299 = vmul.f32 %v288, %v297
        %v300 = vadd.f32 %v285, %v299
        %301 = vset.pattern.permute.xlu0 2
        %302 = vperm.xlu0 %301, %v278
        %v303 = vpop.permute.xlu0 %302
        %305 = vrot.lane.b32.xlu0 %v277, 126
        %v306 = vpop.permute.xlu0 %305
        %307 = vrot.lane.b32.xlu0 %v291, 126
        %v308 = vpop.permute.xlu0 %307
        %vm309 = vcmask 1031168
        %v310 = vsel %vm309, %v306, %v308
        %v312 = vmul.f32 %v303, %v310
        %v313 = vadd.f32 %v300, %v312
        %s314 = sld [smem:[#allocation2]]
        %vm315 = vcmp.ge.f32.partialorder %v313, 0.0
        %v316 = vstv %s314
        %v317 = vmul.f32 %v316, %v313
        %v318 = vsel %vm315, %v313, %v317
        %s319 = smul.u32 %s29, 128
        %v320 = vlaneseq
        %v321 = vand.u32 %v320, 127
        %v322 = vstv %s319
        %v323 = vadd.s32 %v322, %v321
        %vm324 = vcmp.lt.s32.totalorder %v323, 16
        %v325 = vsel %vm324, %v318, 0.0
        %p326 = scmp.eq.s32.totalorder %s29, 0
        // Predicated region
        $region37: #{tpu_custom_call.1} parent=31 // pred_check
          %p327 = pneg %p326
        $region38: #{tpu_custom_call.1} parent=31 // pred_check_branch
          %329 = sbr.rel (%p327) target = $region40
        $region39: #{tpu_custom_call.1} parent=31 // pred_region
          %vm330 = vcmask 0
          %331 = vst.msk [vmem:[%s273] sm:$0x1] %vm330, 0.0
          %332 = vst.msk [vmem:[%s276] sm:$0x1] %vm330, 0.0
        $region40: #{tpu_custom_call.1} parent=31 // pred_fallthru
          _
        %vm333 = vcmask 1043456
        %v334 = vsel %vm333, %v325, 0.0
        %335 = vadd.xlane.f32.xlu0 %v334
        %v336 = vpop.xlane.xlu0 %335
        %v337 = vsel %vm333, %v336, 0.0
        %v338 = vrot.slane %v337, 4
        %v339 = vadd.f32 %v337, %v338
        %v340 = vrot.slane %v339, 2
        %v341 = vadd.f32 %v339, %v340
        %v342 = vrot.slane %v341, 1
        %v343 = vadd.f32 %v341, %v342
        %v344 = vmul.f32 %v325, %v325
        %v345 = vsel %vm333, %v344, 0.0
        %346 = vadd.xlane.f32.xlu0 %v345
        %v347 = vpop.xlane.xlu0 %346
        %v348 = vsel %vm333, %v347, 0.0
        %v349 = vrot.slane %v348, 4
        %v350 = vadd.f32 %v348, %v349
        %v351 = vrot.slane %v350, 2
        %v352 = vadd.f32 %v350, %v351
        %v353 = vrot.slane %v352, 1
        %v354 = vadd.f32 %v352, %v353
        %v355 = vld [vmem:[%s273] sm:$0x1]
        %v356 = vadd.f32 %v355, %v343
        %vm357 = vcmask 0
        %358 = vst.msk [vmem:[%s273] sm:$0x1] %vm357, %v356
        %v359 = vld [vmem:[%s276] sm:$0x1]
        %v360 = vadd.f32 %v359, %v354
        %361 = vst.msk [vmem:[%s276] sm:$0x1] %vm357, %v360
        %v362 = vpack.c.bf16 %v325, %v325
        %363 = vst [vmem:[%s260] sm:$0x3] %v362
        %s364 = sand.u32 %s116, 1
        %s365 = scalar_lea.sflag [#allocation5], %s364
        %s366 = sand.u32 %s116, 1
        %s367 = smul.addr %s366, 2
        %s368 = scalar_lea.vmem [#allocation6], %s367
        %p369 = scmp.lt.s32.totalorder %s28, 1
        %s370 = scalar_select %p369, %s28, 1
        %s371 = scalar_lea.vmem %s4, %s370
        %p372 = scmp.lt.s32.totalorder %s28, 1
        %s373 = scalar_select %p372, %s28, 1
        %s374 = scalar_lea.vmem %s5, %s373
        // Predicated region
        $region41: #{tpu_custom_call.1} parent=31 // pred_check
          %p375 = pneg %p126
        $region42: #{tpu_custom_call.1} parent=31 // pred_check_branch
          %377 = sbr.rel (%p375) target = $region44
        $region43: #{tpu_custom_call.1} parent=31 // pred_region
          %s379 = ssub.s32 32, 32
          %380 = vsyncadd %s365, %s379
          %s381 = sadd.s32 %s29, %s28
          %s382 = smul.addr %s381, 32
          %s383 = scalar_lea.hbm %s3, %s382
          %s385 = sshll.u32 %s368, 4
          %s386 = int_to_ptr.vmem [resolvable:$true] %s385
          %388 = dma.vmem_to_hbm [thread:$0]  %s386, 32, %s383, %s365
        $region44: #{tpu_custom_call.1} parent=31 // pred_fallthru
          _
        // Predicated region
        $region45: #{tpu_custom_call.1} parent=31 // pred_check
          %p389 = pneg %p152
        $region46: #{tpu_custom_call.1} parent=31 // pred_check_branch
          %391 = sbr.rel (%p389) target = $region48
        $region47: #{tpu_custom_call.1} parent=31 // pred_region
          _
        $region48: #{tpu_custom_call.1} parent=31 // pred_fallthru
          _
        // Predicated region
        $region49: #{tpu_custom_call.1} parent=31 // pred_check
          %p392 = pneg %p178
        $region50: #{tpu_custom_call.1} parent=31 // pred_check_branch
          %394 = sbr.rel (%p392) target = $region52
        $region51: #{tpu_custom_call.1} parent=31 // pred_region
          _
        $region52: #{tpu_custom_call.1} parent=31 // pred_fallthru
          _
      $region32: #{tpu_custom_call.1} parent=5 // pred_fallthru
        _
      %p395 = scmp.le.s32.totalorder 2, %s19
      // Predicated region
      $region53: #{tpu_custom_call.1} parent=5 // pred_check
        %p396 = pneg %p395
      $region54: #{tpu_custom_call.1} parent=5 // pred_check_branch
        %398 = sbr.rel (%p396) target = $region56
      $region55: #{tpu_custom_call.1} parent=5 // pred_region
        %s399 = ssub.s32 %s19, 2
        // Predicated region
        $region57: #{tpu_custom_call.1} parent=55 // pred_check
          %p400 = pneg %p132
        $region58: #{tpu_custom_call.1} parent=55 // pred_check_branch
          %402 = sbr.rel (%p400) target = $region60
        $region59: #{tpu_custom_call.1} parent=55 // pred_region
          %s403 = sand.u32 %s117, 1
          %s404 = scalar_lea.sflag [#allocation5], %s403
          %s405 = sand.u32 %s117, 1
          %s406 = smul.addr %s405, 2
          %s407 = scalar_lea.vmem [#allocation6], %s406
          %408 = dma.done %s404, 32
        $region60: #{tpu_custom_call.1} parent=55 // pred_fallthru
          _
        // Predicated region
        $region61: #{tpu_custom_call.1} parent=55 // pred_check
          %p409 = pneg %p158
        $region62: #{tpu_custom_call.1} parent=55 // pred_check_branch
          %411 = sbr.rel (%p409) target = $region64
        $region63: #{tpu_custom_call.1} parent=55 // pred_region
          %p412 = scmp.lt.s32.totalorder %s30, 1
          %s413 = scalar_select %p412, %s30, 1
          %s414 = scalar_lea.vmem %s4, %s413
        $region64: #{tpu_custom_call.1} parent=55 // pred_fallthru
          _
        // Predicated region
        $region65: #{tpu_custom_call.1} parent=55 // pred_check
          %p415 = pneg %p184
        $region66: #{tpu_custom_call.1} parent=55 // pred_check_branch
          %417 = sbr.rel (%p415) target = $region68
        $region67: #{tpu_custom_call.1} parent=55 // pred_region
          %p418 = scmp.lt.s32.totalorder %s30, 1
          %s419 = scalar_select %p418, %s30, 1
          %s420 = scalar_lea.vmem %s5, %s419
        $region68: #{tpu_custom_call.1} parent=55 // pred_fallthru
          _
      $region56: #{tpu_custom_call.1} parent=5 // pred_fallthru
        _
    $region6: #{tpu_custom_call.1} parent=1 // loop_footer
      %s23 = sadd.s32 1, %s19
    $region7: #{tpu_custom_call.1} parent=1 // loop_footer_branch
      %18 = sbr.rel target = $region3
    $region8: #{tpu_custom_call.1} parent=1 // loop_exit
      _
    %421 = vsyncpa [#allocation4], 1
    %s422 = scalar_lea.sflag [#allocation4], 1
    %423 = vsyncpa %s422, 1
    %424 = vsyncpa [#allocation5], 1
    %s425 = scalar_lea.sflag [#allocation5], 1
    %426 = vsyncpa %s425, 1

</llo_original>
